<compile_context>
chip_gen: v7x
topology: tpu7x:2x2x1
jax: 0.10.0
libtpu: 0.0.40
codegen_flags: <defaults>
</compile_context>

<pallas_src>
import functools

import jax
import jax.numpy as jnp
from jax.experimental import pallas as pl
from jax.experimental.pallas import tpu as pltpu

# Flip to True to route the softmax denominator through the EUP approximate
# reciprocal (slightly lower precision, frees a VPU divide).
APPROX_RECIPROCAL = False


def _mfvi_kernel(unary_ref, mask_ref, rhs_ref, out_ref, *,
                 iterations, seq_len, tagset):
    R = unary_ref.shape[0]                         # rows in this block = NB * S
    unary = unary_ref[...].astype(jnp.float32)     # (R, T)
    m = mask_ref[...].astype(jnp.float32)          # (R, 1)
    rhs = rhs_ref[...].astype(jnp.float32)         # (T, 2T) = [trans | trans.T]

    unary = unary * m                              # masked unary potential
    q = unary

    # Loop-invariant boundary masks (hoisted): position of each row within
    # its own sequence. Rolls below cross sequence boundaries only on rows
    # that are masked off here, so no message leaks between sequences.
    pos = jax.lax.broadcasted_iota(jnp.int32, (R, tagset), 0) % seq_len
    left_ok = pos >= 1                 # left message lands on positions 1..S-1
    right_ok = pos < seq_len - 1       # right message lands on positions 0..S-2

    for _ in range(iterations):
        # softmax over the tag (lane) axis.
        q_max = jnp.max(q, axis=-1, keepdims=True)
        e = jnp.exp(q - q_max)
        denom = jnp.sum(e, axis=-1, keepdims=True)
        q = e * pl.reciprocal(denom, approx=APPROX_RECIPROCAL)

        # Fused second-order messages: one MXU matmul, then lane-slice.
        msgs = jnp.dot(q, rhs, preferred_element_type=jnp.float32)  # (R, 2T)
        left_full = msgs[:, :tagset]       # q[s] @ trans
        right_full = msgs[:, tagset:]      # q[s] @ trans.T

        # left_msg[s]  = left_full[s-1]  for s >= 1     (shift down one row)
        # right_msg[s] = right_full[s+1] for s <= S-2   (shift up one row)
        left_msg = jnp.where(left_ok, pltpu.roll(left_full, 1, axis=0), 0.0)
        right_msg = jnp.where(right_ok, pltpu.roll(right_full, R - 1, axis=0), 0.0)

        q = (unary + left_msg + right_msg) * m

    out_ref[...] = q.astype(out_ref.dtype)


def mfvi_forward(token_feats, unary_score, mask, lengths, transitions,
                 iterations=3, seqs_per_block=None):
    """MFVI.forward with default flags. token_feats / lengths are accepted for
    API parity (unused in the non-quadrilinear, no-start/end path)."""
    del token_feats, lengths
    N, S, T = unary_score.shape
    dtype = unary_score.dtype
    if S <= 1:
        return unary_score * mask[..., None].astype(dtype)

    # ---- choose sequences-per-block (NB) -----------------------------------
    if seqs_per_block is None:
        target_rows = 256                    # MXU M fill on v6e/v7x (>=128 covers v5e)
        nb = max(1, target_rows // S)
        if N >= 2:
            # keep at least 2 grid steps so both v7x TensorCores get work
            nb = min(nb, max(1, pl.cdiv(N, 2)))
        else:
            nb = 1
    else:
        nb = max(1, int(seqs_per_block))
    # sublane alignment: rows-per-block must be a multiple of 8
    while (nb * S) % 8 != 0:
        nb += 1
    rows_per_block = nb * S

    # ---- pad batch so NB divides it, flatten to (rows, T) ------------------
    n_blocks = pl.cdiv(N, nb)
    n_pad = n_blocks * nb
    if n_pad != N:
        pad = n_pad - N
        unary_p = jnp.concatenate(
            [unary_score, jnp.zeros((pad, S, T), dtype)], axis=0)
        mask_p = jnp.concatenate(
            [mask, jnp.zeros((pad, S), mask.dtype)], axis=0)
    else:
        unary_p, mask_p = unary_score, mask

    unary2 = unary_p.reshape(n_pad * S, T)
    mask2 = mask_p.astype(dtype).reshape(n_pad * S, 1)
    # Fused transition rhs, built once in the wrapper: (T, 2T).
    rhs = jnp.concatenate([transitions, transitions.T], axis=1)

    kernel = functools.partial(_mfvi_kernel, iterations=iterations,
                               seq_len=S, tagset=T)

    out2 = pl.pallas_call(
        kernel,
        out_shape=jax.ShapeDtypeStruct((n_pad * S, T), dtype),
        grid_spec=pltpu.PrefetchScalarGridSpec(
            num_scalar_prefetch=0,
            grid=(n_blocks,),
            in_specs=[
                pl.BlockSpec((rows_per_block, T), lambda i: (i, 0)),  # unary rows
                pl.BlockSpec((rows_per_block, 1), lambda i: (i, 0)),  # mask rows
                pl.BlockSpec((T, 2 * T), lambda i: (0, 0)),           # [trans|trans.T]
            ],
            out_specs=pl.BlockSpec((rows_per_block, T), lambda i: (i, 0)),
        ),
        compiler_params=pltpu.CompilerParams(
            dimension_semantics=("parallel",)),
    )(unary2, mask2, rhs)

    return out2.reshape(n_pad, S, T)[:N]


def _mfvi_ref(unary, mask, trans, iterations):
    """Pure-JAX reference mirroring the PyTorch _mean_field_variational_infernece."""
    m = mask[..., None]
    unary = unary * m
    q = unary
    for _ in range(iterations):
        q = jax.nn.softmax(q, axis=-1)
        left = jnp.zeros_like(q)
        right = jnp.zeros_like(q)
        left = left.at[:, 1:].add(jnp.einsum('nsa,ab->nsb', q[:, :-1], trans))
        right = right.at[:, :-1].add(jnp.einsum('nsb,ab->nsa', q[:, 1:], trans))
        q = unary + left + right
        q = q * m
    return q


if __name__ == "__main__":
    # Small shapes consistent with the module: batch=2, seq=8, tags=8, hidden=32.
    N, S, T, H = 2, 8, 8, 32
    ITERS = 3

    key = jax.random.PRNGKey(0)
    k1, k2, k3 = jax.random.split(key, 3)

    token_feats = jax.random.normal(k1, (N, S, H), jnp.float32)
    unary_score = jax.random.normal(k2, (N, S, T), jnp.float32)
    # nn.Parameter(torch.randn(window_size, T, T)) -> deterministic random init here.
    transitions = jax.random.normal(k3, (1, T, T), jnp.float32)

    lengths = jnp.array([8, 6], dtype=jnp.int32)
    mask = (jnp.arange(S)[None, :] < lengths[:, None]).astype(jnp.float32)

    out = mfvi_forward(token_feats, unary_score, mask, lengths, transitions[0],
                       iterations=ITERS)
    out = jax.block_until_ready(out)

    ref = _mfvi_ref(unary_score, mask, transitions[0], ITERS)
    assert out.shape == (N, S, T) and out.dtype == jnp.float32
    assert jnp.allclose(out, ref, atol=1e-4, rtol=1e-4), "mismatch vs reference"

    # TODO(synk): quadrilinear/hexalinear (QuadriLinearScore/HexaLinearScore) and
    # add_start_end / third-order paths are off by default and not implemented.
    print("KERNEL_OK")
</pallas_src>

<mosaic_0001>
module attributes {stable_mosaic.version = 11 : i64} {
  func.func @_mfvi_kernel(%arg0: i32, %arg1: memref<8x8xf32, #tpu.memory_space<vmem>>, %arg2: memref<8x1xf32, #tpu.memory_space<vmem>>, %arg3: memref<8x16xf32, #tpu.memory_space<vmem>>, %arg4: memref<8x8xf32, #tpu.memory_space<vmem>>) attributes {dimension_semantics = [#tpu.dimension_semantics<parallel>], iteration_bounds = array<i64: 2>, scalar_prefetch = 0 : i64, scratch_operands = 0 : i64, tpu.core_type = #tpu.core_type<tc>, window_params = [{transform_indices = @transform_0, window_bounds = array<i64: 8, 8>}, {transform_indices = @transform_1, window_bounds = array<i64: 8, 1>}, {pipeline_mode = #tpu.pipeline_mode<synchronous>, transform_indices = @transform_2, window_bounds = array<i64: 8, 16>}, {transform_indices = @transform_3, window_bounds = array<i64: 8, 8>}]} {
    %c0 = arith.constant 0 : index
    %c0_0 = arith.constant 0 : index
    %0 = vector.load %arg1[%c0, %c0_0] : memref<8x8xf32, #tpu.memory_space<vmem>>, vector<8x8xf32>
    %c0_1 = arith.constant 0 : index
    %c0_2 = arith.constant 0 : index
    %1 = vector.load %arg2[%c0_1, %c0_2] : memref<8x1xf32, #tpu.memory_space<vmem>>, vector<8x1xf32>
    %c0_3 = arith.constant 0 : index
    %c0_4 = arith.constant 0 : index
    %2 = vector.load %arg3[%c0_3, %c0_4] : memref<8x16xf32, #tpu.memory_space<vmem>>, vector<8x16xf32>
    %3 = vector.broadcast %1 : vector<8x1xf32> to vector<8x8xf32>
    %4 = arith.mulf %0, %3 : vector<8x8xf32>
    %5 = tpu.iota {dimensions = array<i32: 0>} : vector<8x8xi32>
    %c8_i32 = arith.constant 8 : i32
    %c0_i32 = arith.constant 0 : i32
    %6 = arith.cmpi eq, %c8_i32, %c0_i32 : i32
    %c1_i32 = arith.constant 1 : i32
    %7 = arith.select %6, %c1_i32, %c8_i32 : i32
    %8 = vector.broadcast %7 : i32 to vector<8x8xi32>
    %9 = arith.remsi %5, %8 : vector<8x8xi32>
    %c0_i32_5 = arith.constant 0 : i32
    %10 = vector.broadcast %c0_i32_5 : i32 to vector<8x8xi32>
    %11 = arith.cmpi ne, %9, %10 : vector<8x8xi32>
    %c0_i32_6 = arith.constant 0 : i32
    %12 = vector.broadcast %c0_i32_6 : i32 to vector<8x8xi32>
    %13 = arith.cmpi slt, %9, %12 : vector<8x8xi32>
    %c0_i32_7 = arith.constant 0 : i32
    %14 = arith.cmpi slt, %7, %c0_i32_7 : i32
    %15 = vector.broadcast %14 : i1 to vector<8x8xi1>
    %16 = vector.broadcast %15 : vector<8x8xi1> to vector<8x8xi1>
    %17 = arith.xori %13, %16 : vector<8x8xi1>
    %18 = arith.andi %17, %11 : vector<8x8xi1>
    %19 = vector.broadcast %7 : i32 to vector<8x8xi32>
    %20 = arith.addi %9, %19 : vector<8x8xi32>
    %21 = arith.select %18, %20, %9 : vector<8x8xi1>, vector<8x8xi32>
    %c1_i32_8 = arith.constant 1 : i32
    %22 = vector.broadcast %c1_i32_8 : i32 to vector<8x8xi32>
    %23 = arith.cmpi sge, %21, %22 : vector<8x8xi32>
    %c7_i32 = arith.constant 7 : i32
    %24 = vector.broadcast %c7_i32 : i32 to vector<8x8xi32>
    %25 = arith.cmpi slt, %21, %24 : vector<8x8xi32>
    %cst = arith.constant dense<0xFF800000> : vector<8xf32>
    %26 = vector.multi_reduction <maximumf>, %4, %cst [1] : vector<8x8xf32> to vector<8xf32>
    %27 = vector.shape_cast %26 : vector<8xf32> to vector<8x1xf32>
    %28 = vector.broadcast %27 : vector<8x1xf32> to vector<8x8xf32>
    %29 = arith.subf %4, %28 : vector<8x8xf32>
    %30 = math.exp %29 : vector<8x8xf32>
    %cst_9 = arith.constant dense<0.000000e+00> : vector<8xf32>
    %31 = vector.multi_reduction <add>, %30, %cst_9 [1] : vector<8x8xf32> to vector<8xf32>
    %32 = vector.shape_cast %31 : vector<8xf32> to vector<8x1xf32>
    %33 = tpu.reciprocal %32 : vector<8x1xf32> -> vector<8x1xf32>
    %34 = vector.broadcast %33 : vector<8x1xf32> to vector<8x8xf32>
    %35 = arith.mulf %30, %34 : vector<8x8xf32>
    %cst_10 = arith.constant dense<0.000000e+00> : vector<8x16xf32>
    %36 = tpu.matmul %35, %2, %cst_10 {dimension_numbers = #tpu.dot_dimension_numbers<[1], [0], [0], [1], [0, 0, 1, 1], [], []>} : vector<8x8xf32>, vector<8x16xf32>, vector<8x16xf32> -> vector<8x16xf32>
    %37 = vector.extract_strided_slice %36 {offsets = [0, 0], sizes = [8, 8], strides = [1, 1]} : vector<8x16xf32> to vector<8x8xf32>
    %38 = vector.extract_strided_slice %36 {offsets = [0, 8], sizes = [8, 8], strides = [1, 1]} : vector<8x16xf32> to vector<8x8xf32>
    %c1_i32_11 = arith.constant 1 : i32
    %39 = tpu.dynamic_rotate %37 by %c1_i32_11 dim 0 : vector<8x8xf32>, i32 -> vector<8x8xf32>
    %cst_12 = arith.constant 0.000000e+00 : f32
    %40 = vector.broadcast %cst_12 : f32 to vector<8x8xf32>
    %41 = arith.select %23, %39, %40 : vector<8x8xi1>, vector<8x8xf32>
    %c7_i32_13 = arith.constant 7 : i32
    %42 = tpu.dynamic_rotate %38 by %c7_i32_13 dim 0 : vector<8x8xf32>, i32 -> vector<8x8xf32>
    %cst_14 = arith.constant 0.000000e+00 : f32
    %43 = vector.broadcast %cst_14 : f32 to vector<8x8xf32>
    %44 = arith.select %25, %42, %43 : vector<8x8xi1>, vector<8x8xf32>
    %45 = arith.addf %4, %41 : vector<8x8xf32>
    %46 = arith.addf %45, %44 : vector<8x8xf32>
    %47 = vector.broadcast %1 : vector<8x1xf32> to vector<8x8xf32>
    %48 = arith.mulf %46, %47 : vector<8x8xf32>
    %cst_15 = arith.constant dense<0xFF800000> : vector<8xf32>
    %49 = vector.multi_reduction <maximumf>, %48, %cst_15 [1] : vector<8x8xf32> to vector<8xf32>
    %50 = vector.shape_cast %49 : vector<8xf32> to vector<8x1xf32>
    %51 = vector.broadcast %50 : vector<8x1xf32> to vector<8x8xf32>
    %52 = arith.subf %48, %51 : vector<8x8xf32>
    %53 = math.exp %52 : vector<8x8xf32>
    %cst_16 = arith.constant dense<0.000000e+00> : vector<8xf32>
    %54 = vector.multi_reduction <add>, %53, %cst_16 [1] : vector<8x8xf32> to vector<8xf32>
    %55 = vector.shape_cast %54 : vector<8xf32> to vector<8x1xf32>
    %56 = tpu.reciprocal %55 : vector<8x1xf32> -> vector<8x1xf32>
    %57 = vector.broadcast %56 : vector<8x1xf32> to vector<8x8xf32>
    %58 = arith.mulf %53, %57 : vector<8x8xf32>
    %cst_17 = arith.constant dense<0.000000e+00> : vector<8x16xf32>
    %59 = tpu.matmul %58, %2, %cst_17 {dimension_numbers = #tpu.dot_dimension_numbers<[1], [0], [0], [1], [0, 0, 1, 1], [], []>} : vector<8x8xf32>, vector<8x16xf32>, vector<8x16xf32> -> vector<8x16xf32>
    %60 = vector.extract_strided_slice %59 {offsets = [0, 0], sizes = [8, 8], strides = [1, 1]} : vector<8x16xf32> to vector<8x8xf32>
    %61 = vector.extract_strided_slice %59 {offsets = [0, 8], sizes = [8, 8], strides = [1, 1]} : vector<8x16xf32> to vector<8x8xf32>
    %c1_i32_18 = arith.constant 1 : i32
    %62 = tpu.dynamic_rotate %60 by %c1_i32_18 dim 0 : vector<8x8xf32>, i32 -> vector<8x8xf32>
    %cst_19 = arith.constant 0.000000e+00 : f32
    %63 = vector.broadcast %cst_19 : f32 to vector<8x8xf32>
    %64 = arith.select %23, %62, %63 : vector<8x8xi1>, vector<8x8xf32>
    %c7_i32_20 = arith.constant 7 : i32
    %65 = tpu.dynamic_rotate %61 by %c7_i32_20 dim 0 : vector<8x8xf32>, i32 -> vector<8x8xf32>
    %cst_21 = arith.constant 0.000000e+00 : f32
    %66 = vector.broadcast %cst_21 : f32 to vector<8x8xf32>
    %67 = arith.select %25, %65, %66 : vector<8x8xi1>, vector<8x8xf32>
    %68 = arith.addf %4, %64 : vector<8x8xf32>
    %69 = arith.addf %68, %67 : vector<8x8xf32>
    %70 = vector.broadcast %1 : vector<8x1xf32> to vector<8x8xf32>
    %71 = arith.mulf %69, %70 : vector<8x8xf32>
    %cst_22 = arith.constant dense<0xFF800000> : vector<8xf32>
    %72 = vector.multi_reduction <maximumf>, %71, %cst_22 [1] : vector<8x8xf32> to vector<8xf32>
    %73 = vector.shape_cast %72 : vector<8xf32> to vector<8x1xf32>
    %74 = vector.broadcast %73 : vector<8x1xf32> to vector<8x8xf32>
    %75 = arith.subf %71, %74 : vector<8x8xf32>
    %76 = math.exp %75 : vector<8x8xf32>
    %cst_23 = arith.constant dense<0.000000e+00> : vector<8xf32>
    %77 = vector.multi_reduction <add>, %76, %cst_23 [1] : vector<8x8xf32> to vector<8xf32>
    %78 = vector.shape_cast %77 : vector<8xf32> to vector<8x1xf32>
    %79 = tpu.reciprocal %78 : vector<8x1xf32> -> vector<8x1xf32>
    %80 = vector.broadcast %79 : vector<8x1xf32> to vector<8x8xf32>
    %81 = arith.mulf %76, %80 : vector<8x8xf32>
    %cst_24 = arith.constant dense<0.000000e+00> : vector<8x16xf32>
    %82 = tpu.matmul %81, %2, %cst_24 {dimension_numbers = #tpu.dot_dimension_numbers<[1], [0], [0], [1], [0, 0, 1, 1], [], []>} : vector<8x8xf32>, vector<8x16xf32>, vector<8x16xf32> -> vector<8x16xf32>
    %83 = vector.extract_strided_slice %82 {offsets = [0, 0], sizes = [8, 8], strides = [1, 1]} : vector<8x16xf32> to vector<8x8xf32>
    %84 = vector.extract_strided_slice %82 {offsets = [0, 8], sizes = [8, 8], strides = [1, 1]} : vector<8x16xf32> to vector<8x8xf32>
    %c1_i32_25 = arith.constant 1 : i32
    %85 = tpu.dynamic_rotate %83 by %c1_i32_25 dim 0 : vector<8x8xf32>, i32 -> vector<8x8xf32>
    %cst_26 = arith.constant 0.000000e+00 : f32
    %86 = vector.broadcast %cst_26 : f32 to vector<8x8xf32>
    %87 = arith.select %23, %85, %86 : vector<8x8xi1>, vector<8x8xf32>
    %c7_i32_27 = arith.constant 7 : i32
    %88 = tpu.dynamic_rotate %84 by %c7_i32_27 dim 0 : vector<8x8xf32>, i32 -> vector<8x8xf32>
    %cst_28 = arith.constant 0.000000e+00 : f32
    %89 = vector.broadcast %cst_28 : f32 to vector<8x8xf32>
    %90 = arith.select %25, %88, %89 : vector<8x8xi1>, vector<8x8xf32>
    %91 = arith.addf %4, %87 : vector<8x8xf32>
    %92 = arith.addf %91, %90 : vector<8x8xf32>
    %93 = vector.broadcast %1 : vector<8x1xf32> to vector<8x8xf32>
    %94 = arith.mulf %92, %93 : vector<8x8xf32>
    %c0_29 = arith.constant 0 : index
    %c0_30 = arith.constant 0 : index
    %95 = vector.load %arg4[%c0_29, %c0_30] : memref<8x8xf32, #tpu.memory_space<vmem>>, vector<8x8xf32>
    tpu.vector_store %arg4[%c0_29, %c0_30], %94 {strides = array<i32>} : memref<8x8xf32, #tpu.memory_space<vmem>>, vector<8x8xf32>,
    return
  }
  func.func @transform_0(%arg0: i32) -> (i32, i32) {
    %c0_i32 = arith.constant 0 : i32
    %c0_i32_0 = arith.constant 0 : i32
    return %arg0, %c0_i32 : i32, i32
  }
  func.func @transform_1(%arg0: i32) -> (i32, i32) {
    %c0_i32 = arith.constant 0 : i32
    %c0_i32_0 = arith.constant 0 : i32
    return %arg0, %c0_i32 : i32, i32
  }
  func.func @transform_2(%arg0: i32) -> (i32, i32) {
    %c0_i32 = arith.constant 0 : i32
    %c0_i32_0 = arith.constant 0 : i32
    %c0_i32_1 = arith.constant 0 : i32
    return %c0_i32, %c0_i32_0 : i32, i32
  }
  func.func @transform_3(%arg0: i32) -> (i32, i32) {
    %c0_i32 = arith.constant 0 : i32
    %c0_i32_0 = arith.constant 0 : i32
    return %arg0, %c0_i32 : i32, i32
  }
}

</mosaic_0001>

<llo_original>
// kernel: tpu_custom_call.1
$region0: #{tpu_custom_call.1}
  #allocation0 [shape = 'u32[]', space=smem, size = 0x4, offset = 0x4, fixed_abs, tag = 'smem constant byte address 0x4 - core index']
  #allocation1 [shape = 'u32[144,128]{1,0:T(1,128)}', space=vmem, size = 0x12000, scoped, tag = 'internal scratch']
  %s0 = inlined_call_operand.vmem [shape: f32[16,8], index: 0, kind: input, shape index: {}]
  %s1 = inlined_call_operand.vmem [shape: f32[16,1], index: 1, kind: input, shape index: {}]
  %s2 = inlined_call_operand.vmem [shape: f32[8,16], index: 2, kind: input, shape index: {}]
  %s3 = inlined_call_operand.vmem [shape: f32[16,8], index: 3, kind: output, shape index: {}]
  %s4 = sld [smem:[#allocation0]]
  $region45: #{tpu_custom_call.1} parent=0
    _
  %s6 = ssub.s32 1, %s4
  %s7 = scalar_select 0, %s6, %s4
  loop: start=0, step=1, limit=4
  $region2: #{tpu_custom_call.1} parent=0 // loop_pre_header
    _
  $region3: #{tpu_custom_call.1} parent=0 // loop_header
    %s9 = sphi 0, %s13
    %p10 = scmp.ge.s32.totalorder %s9, 4
    %s19 = sphi 0, %s21
    %s22 = sphi 0, %s19
    %s23 = sphi 0, %s22
    %s39 = sphi 0, %s23
    %s45 = sphi 0, %s47
    %s48 = sphi 0, %s45
    %s49 = sphi 0, %s48
    %s65 = sphi 0, %s49
    %s69 = sphi 0, %s69
    %s71 = sphi 0, %s69
    %s72 = sphi 0, %s71
    %s86 = sphi 0, %s72
    %s92 = sphi 0, %s94
    %s95 = sphi 0, %s92
    %s96 = sphi 0, %s95
    %s112 = sphi 0, %s96
  $region4: #{tpu_custom_call.1} parent=0 // loop_header_branch
    %12 = sbr.rel (%p10) target = $region8
  $region5: #{tpu_custom_call.1} parent=0 // loop_body
    %s14 = ssub.s32 %s9, 1
    %s15 = ssub.s32 %s9, 2
    %s16 = sadd.s32 %s9, 1
    %s17 = ssub.s32 %s9, %s16
    %p18 = scmp.eq.s32.totalorder %s17, 0
    %s20 = sadd.s32 %s19, 1
    %s21 = scalar_select %p18, %s19, %s20
    %p24 = pneg %p18
    %p25 = scmp.eq.s32.totalorder %s9, 1
    %p26 = por %p24, %p25
    %p27 = scmp.ne.s32.totalorder %s19, %s22
    %p28 = scmp.eq.s32.totalorder %s9, 0
    %p29 = por %p27, %p28
    %p30 = scmp.ne.s32.totalorder %s19, %s22
    %p31 = scmp.eq.s32.totalorder %s14, 1
    %p32 = por %p30, %p31
    %p33 = scmp.ne.s32.totalorder %s22, %s23
    %p34 = scmp.eq.s32.totalorder %s14, 0
    %p35 = por %p33, %p34
    %p36 = scmp.ne.s32.totalorder %s22, %s23
    %p37 = scmp.eq.s32.totalorder %s15, 1
    %p38 = por %p36, %p37
    %p40 = scmp.ne.s32.totalorder %s23, %s39
    %p41 = scmp.eq.s32.totalorder %s15, 0
    %p42 = por %p40, %p41
    %s43 = ssub.s32 %s9, %s16
    %p44 = scmp.eq.s32.totalorder %s43, 0
    %s46 = sadd.s32 %s45, 1
    %s47 = scalar_select %p44, %s45, %s46
    %p50 = pneg %p44
    %p51 = scmp.eq.s32.totalorder %s9, 1
    %p52 = por %p50, %p51
    %p53 = scmp.ne.s32.totalorder %s45, %s48
    %p54 = scmp.eq.s32.totalorder %s9, 0
    %p55 = por %p53, %p54
    %p56 = scmp.ne.s32.totalorder %s45, %s48
    %p57 = scmp.eq.s32.totalorder %s14, 1
    %p58 = por %p56, %p57
    %p59 = scmp.ne.s32.totalorder %s48, %s49
    %p60 = scmp.eq.s32.totalorder %s14, 0
    %p61 = por %p59, %p60
    %p62 = scmp.ne.s32.totalorder %s48, %s49
    %p63 = scmp.eq.s32.totalorder %s15, 1
    %p64 = por %p62, %p63
    %p66 = scmp.ne.s32.totalorder %s49, %s65
    %p67 = scmp.eq.s32.totalorder %s15, 0
    %p68 = por %p66, %p67
    %s70 = sadd.s32 %s69, 1
    %p73 = scmp.eq.s32.totalorder %s9, 1
    %p74 = scmp.ne.s32.totalorder %s69, %s71
    %p75 = scmp.eq.s32.totalorder %s9, 0
    %p76 = por %p74, %p75
    %p77 = scmp.ne.s32.totalorder %s69, %s71
    %p78 = scmp.eq.s32.totalorder %s14, 1
    %p79 = por %p77, %p78
    %p80 = scmp.ne.s32.totalorder %s71, %s72
    %p81 = scmp.eq.s32.totalorder %s14, 0
    %p82 = por %p80, %p81
    %p83 = scmp.ne.s32.totalorder %s71, %s72
    %p84 = scmp.eq.s32.totalorder %s15, 1
    %p85 = por %p83, %p84
    %p87 = scmp.ne.s32.totalorder %s72, %s86
    %p88 = scmp.eq.s32.totalorder %s15, 0
    %p89 = por %p87, %p88
    %s90 = ssub.s32 %s9, %s16
    %p91 = scmp.eq.s32.totalorder %s90, 0
    %s93 = sadd.s32 %s92, 1
    %s94 = scalar_select %p91, %s92, %s93
    %p97 = pneg %p91
    %p98 = scmp.eq.s32.totalorder %s9, 1
    %p99 = por %p97, %p98
    %p100 = scmp.ne.s32.totalorder %s92, %s95
    %p101 = scmp.eq.s32.totalorder %s9, 0
    %p102 = por %p100, %p101
    %p103 = scmp.ne.s32.totalorder %s92, %s95
    %p104 = scmp.eq.s32.totalorder %s14, 1
    %p105 = por %p103, %p104
    %p106 = scmp.ne.s32.totalorder %s95, %s96
    %p107 = scmp.eq.s32.totalorder %s14, 0
    %p108 = por %p106, %p107
    %p109 = scmp.ne.s32.totalorder %s95, %s96
    %p110 = scmp.eq.s32.totalorder %s15, 1
    %p111 = por %p109, %p110
    %p113 = scmp.ne.s32.totalorder %s96, %s112
    %p114 = scmp.eq.s32.totalorder %s15, 0
    %p115 = por %p113, %p114
    %p116 = scmp.le.s32.totalorder 1, %s9
    %p117 = scmp.lt.s32.totalorder %s9, 3
    %p118 = pnand %p116, %p117
    %p119 = pneg %p118
    // Predicated region
    $region9: #{tpu_custom_call.1} parent=5 // pred_check
      _
    $region10: #{tpu_custom_call.1} parent=5 // pred_check_branch
      %121 = sbr.rel (%p118) target = $region12
    $region11: #{tpu_custom_call.1} parent=5 // pred_region
      %s122 = ssub.s32 %s9, 1
      // Predicated region
      $region13: #{tpu_custom_call.1} parent=11 // pred_check
        %p123 = pneg %p82
      $region14: #{tpu_custom_call.1} parent=11 // pred_check_branch
        %125 = sbr.rel (%p123) target = $region16
      $region15: #{tpu_custom_call.1} parent=11 // pred_region
        _
      $region16: #{tpu_custom_call.1} parent=11 // pred_fallthru
        _
    $region12: #{tpu_custom_call.1} parent=5 // pred_fallthru
      _
    %p126 = scmp.lt.s32.totalorder %s9, 2
    // Predicated region
    $region17: #{tpu_custom_call.1} parent=5 // pred_check
      %p127 = pneg %p126
    $region18: #{tpu_custom_call.1} parent=5 // pred_check_branch
      %129 = sbr.rel (%p127) target = $region20
    $region19: #{tpu_custom_call.1} parent=5 // pred_region
      // Predicated region
      $region21: #{tpu_custom_call.1} parent=19 // pred_check
        %p130 = pneg %p29
      $region22: #{tpu_custom_call.1} parent=19 // pred_check_branch
        %132 = sbr.rel (%p130) target = $region24
      $region23: #{tpu_custom_call.1} parent=19 // pred_region
        %p133 = scmp.lt.s32.totalorder %s9, 1
        %s134 = scalar_select %p133, %s9, 1
        %s135 = smul.addr %s134, 8
        %s136 = scalar_lea.vmem %s0, %s135
      $region24: #{tpu_custom_call.1} parent=19 // pred_fallthru
        _
      // Predicated region
      $region25: #{tpu_custom_call.1} parent=19 // pred_check
        %p137 = pneg %p55
      $region26: #{tpu_custom_call.1} parent=19 // pred_check_branch
        %139 = sbr.rel (%p137) target = $region28
      $region27: #{tpu_custom_call.1} parent=19 // pred_region
        %p140 = scmp.lt.s32.totalorder %s9, 1
        %s141 = scalar_select %p140, %s9, 1
        %s142 = smul.addr %s141, 8
        %s143 = scalar_lea.vmem %s1, %s142
      $region28: #{tpu_custom_call.1} parent=19 // pred_fallthru
        _
    $region20: #{tpu_custom_call.1} parent=5 // pred_fallthru
      _
    %p144 = scmp.le.s32.totalorder 1, %s9
    %p145 = scmp.lt.s32.totalorder %s9, 3
    %p146 = pnand %p144, %p145
    %p147 = pneg %p146
    // Predicated region
    $region29: #{tpu_custom_call.1} parent=5 // pred_check
      _
    $region30: #{tpu_custom_call.1} parent=5 // pred_check_branch
      %149 = sbr.rel (%p146) target = $region32
    $region31: #{tpu_custom_call.1} parent=5 // pred_region
      %s150 = ssub.s32 %s9, 1
      %p151 = scmp.lt.s32.totalorder %s14, 1
      %s152 = scalar_select %p151, %s14, 1
      %s153 = smul.addr %s152, 8
      %s154 = scalar_lea.vmem %s0, %s153
      %p155 = pneg %p35
      %p156 = pneg %p32
      %p157 = scmp.lt.s32.totalorder %s14, 1
      %s158 = scalar_select %p157, %s14, 1
      %s159 = smul.addr %s158, 8
      %s160 = scalar_lea.vmem %s1, %s159
      %p161 = pneg %p61
      %p162 = pneg %p58
      %p163 = pneg %p82
      %p164 = pneg %p79
      %p165 = pneg %p108
      %p166 = pneg %p105
      %p167 = scmp.lt.s32.totalorder %s14, 1
      %s168 = scalar_select %p167, %s14, 1
      %s169 = smul.addr %s168, 8
      %s170 = scalar_lea.vmem %s3, %s169
      %p171 = scmp.lt.s32.totalorder %s14, 1
      %s172 = scalar_select %p171, %s14, 1
      %s173 = smul.addr %s172, 8
      %s174 = scalar_lea.vmem %s0, %s173
      %p175 = scmp.lt.s32.totalorder %s14, 1
      %s176 = scalar_select %p175, %s14, 1
      %s177 = smul.addr %s176, 8
      %s178 = scalar_lea.vmem %s1, %s177
      %p179 = scmp.lt.s32.totalorder %s14, 1
      %s180 = scalar_select %p179, %s14, 1
      %s181 = smul.addr %s180, 8
      %s182 = scalar_lea.vmem %s3, %s181
      %v183 = vld [vmem:[%s174] sm:$0xff]
      %v184 = vld [vmem:[%s178] sm:$0xff]
      %v185 = vld [vmem:[%s2] sm:$0xff]
      %187 = vset.pattern.permute.xlu0 0
      %188 = vperm.xlu0 %187, %v184
      %v189 = vpop.permute.xlu0 %188
      %v191 = vmul.f32 %v183, %v189
      %v192 = vlaneseq
      %v193 = vshrl.u32 %v192, 7
      %vm194 = vcmp.lt.s32.totalorder %v193, 0
      %v195 = vsub.s32 0, %v193
      %v196 = vsel %vm194, %v195, %v193
      %v197 = vshrl.u32 %v196, 3
      %v198 = vand.u32 %v196, 7
      %v199 = vsub.s32 0, %v198
      %v200 = vsel %vm194, %v199, %v198
      %vm201 = vcmp.ne.s32.totalorder %v200, 0
      %vm202 = vcmp.lt.s32.totalorder %v200, 0
      %vm203 = vmand %vm202, %vm201
      %v204 = vadd.s32 %v200, 8
      %v205 = vsel %vm203, %v204, %v200
      %vm206 = vcmp.ge.s32.totalorder %v205, 1
      %vm207 = vcmp.lt.s32.totalorder %v205, 7
      %vm208 = vcmask 64512
      %v209 = vsel %vm208, %v191, -inf
      %210 = vmax.xlane.f32.xlu0 %v209
      %v211 = vpop.xlane.xlu0 %210
      %v212 = vsub.f32 %v191, %v211
      %v213 = vmul.f32 %v212, 1.442695
      %v214 = vpow.pop %v213
      %v215 = vsel %vm208, %v214, 0.0
      %216 = vadd.xlane.f32.xlu0 %v215
      %v217 = vpop.xlane.xlu0 %216
      %v218 = vrcp.pop %v217
      %v219 = vmul.f32 %v214, %v218
      %v221 = vsel %vm208, %v219, 0
      %223 = vmatprep.subr.mxu0 0.0
      %224 = vmatpush1.msra.mxu0 %v185
      %225 = vmatprep.subr.mxu0 0.0
      %226 = vmatpush1.msra.mxu0 0.0
      %227 = vmatprep.subr.mxu0 0.0
      %228 = vmatpush1.msra.mxu0 0.0
      %229 = vmatprep.subr.mxu0 0.0
      %230 = vmatpush1.msra.mxu0 0.0
      %231 = vmatprep.subr.mxu0 0.0
      %232 = vmatpush1.msra.mxu0 0.0
      %233 = vmatprep.subr.mxu0 0.0
      %234 = vmatpush1.msra.mxu0 0.0
      %235 = vmatprep.subr.mxu0 0.0
      %236 = vmatpush1.msra.mxu0 0.0
      %237 = vmatprep.subr.mxu0 0.0
      %238 = vmatpush1.msra.mxu0 0.0
      %239 = vmatprep.subr.mxu0 0.0
      %240 = vmatpush1.msra.mxu0 0.0
      %241 = vmatprep.subr.mxu0 0.0
      %242 = vmatpush1.msra.mxu0 0.0
      %243 = vmatprep.subr.mxu0 0.0
      %244 = vmatpush1.msra.mxu0 0.0
      %245 = vmatprep.subr.mxu0 0.0
      %246 = vmatpush1.msra.mxu0 0.0
      %247 = vmatprep.subr.mxu0 0.0
      %248 = vmatpush1.msra.mxu0 0.0
      %249 = vmatprep.subr.mxu0 0.0
      %250 = vmatpush1.msra.mxu0 0.0
      %251 = vmatprep.subr.mxu0 0.0
      %252 = vmatpush1.msra.mxu0 0.0
      %253 = vmatprep.subr.mxu0 0.0
      %254 = vmatpush1.msra.mxu0 0.0
      %255 = vmatprep.subr.mxu0 0.0
      %256 = vmatpush1.msra.mxu0 0.0
      %257 = vmatprep.subr.mxu0 0.0
      %258 = vmatpush1.msra.mxu0 0.0
      %259 = vmatprep.subr.mxu0 0.0
      %260 = vmatpush1.msra.mxu0 0.0
      %261 = vmatprep.subr.mxu0 0.0
      %262 = vmatpush1.msra.mxu0 0.0
      %263 = vmatprep.subr.mxu0 0.0
      %264 = vmatpush1.msra.mxu0 0.0
      %265 = vmatprep.subr.mxu0 0.0
      %266 = vmatpush1.msra.mxu0 0.0
      %267 = vmatprep.subr.mxu0 0.0
      %268 = vmatpush1.msra.mxu0 0.0
      %269 = vmatprep.subr.mxu0 0.0
      %270 = vmatpush1.msra.mxu0 0.0
      %271 = vmatprep.subr.mxu0 0.0
      %272 = vmatpush1.msra.mxu0 0.0
      %273 = vmatprep.subr.mxu0 0.0
      %274 = vmatpush1.msra.mxu0 0.0
      %275 = vmatprep.subr.mxu0 0.0
      %276 = vmatpush1.msra.mxu0 0.0
      %277 = vmatprep.subr.mxu0 0.0
      %278 = vmatpush1.msra.mxu0 0.0
      %279 = vmatprep.subr.mxu0 0.0
      %280 = vmatpush1.msra.mxu0 0.0
      %281 = vmatprep.subr.mxu0 0.0
      %282 = vmatpush1.msra.mxu0 0.0
      %283 = vmatprep.subr.mxu0 0.0
      %284 = vmatpush1.msra.mxu0 0.0
      %285 = vmatprep.subr.mxu0 0.0
      %286 = vmatpush1.msra.mxu0 0.0
      %287 = vmatprep.mubr.f32.mxu0 0.0
      %288 = vmatmul.mubr.f32.gmra.mrb[0].mxu0 %v221
      %v289 = vpop.f32.mrb[0].mxu0
      %v290 = vadd.f32 0.0, %v289
      %v291 = vpop.f32.mrb[0].mxu0
      %292 = vdwg.mxu0
      %v293 = vrot.slane %v290, 7
      %v294 = vsel %vm206, %v293, 0.0
      %296 = vrot.lane.b32.xlu0 %v290, 120
      %v297 = vpop.permute.xlu0 %296
      %v299 = vrot.slane %v297, 1
      %v300 = vsel %vm207, %v299, 0.0
      %v301 = vadd.f32 %v191, %v294
      %v302 = vadd.f32 %v301, %v300
      %v303 = vmul.f32 %v302, %v189
      %v304 = vsel %vm208, %v303, -inf
      %305 = vmax.xlane.f32.xlu0 %v304
      %v306 = vpop.xlane.xlu0 %305
      %v307 = vsub.f32 %v303, %v306
      %v308 = vmul.f32 %v307, 1.442695
      %v309 = vpow.pop %v308
      %v310 = vsel %vm208, %v309, 0.0
      %311 = vadd.xlane.f32.xlu0 %v310
      %v312 = vpop.xlane.xlu0 %311
      %v313 = vrcp.pop %v312
      %v314 = vmul.f32 %v309, %v313
      %v316 = vsel %vm208, %v314, 0
      %318 = vmatprep.subr.mxu0 0.0
      %319 = vmatpush1.msra.mxu0 %v185
      %320 = vmatprep.subr.mxu0 0.0
      %321 = vmatpush1.msra.mxu0 0.0
      %322 = vmatprep.subr.mxu0 0.0
      %323 = vmatpush1.msra.mxu0 0.0
      %324 = vmatprep.subr.mxu0 0.0
      %325 = vmatpush1.msra.mxu0 0.0
      %326 = vmatprep.subr.mxu0 0.0
      %327 = vmatpush1.msra.mxu0 0.0
      %328 = vmatprep.subr.mxu0 0.0
      %329 = vmatpush1.msra.mxu0 0.0
      %330 = vmatprep.subr.mxu0 0.0
      %331 = vmatpush1.msra.mxu0 0.0
      %332 = vmatprep.subr.mxu0 0.0
      %333 = vmatpush1.msra.mxu0 0.0
      %334 = vmatprep.subr.mxu0 0.0
      %335 = vmatpush1.msra.mxu0 0.0
      %336 = vmatprep.subr.mxu0 0.0
      %337 = vmatpush1.msra.mxu0 0.0
      %338 = vmatprep.subr.mxu0 0.0
      %339 = vmatpush1.msra.mxu0 0.0
      %340 = vmatprep.subr.mxu0 0.0
      %341 = vmatpush1.msra.mxu0 0.0
      %342 = vmatprep.subr.mxu0 0.0
      %343 = vmatpush1.msra.mxu0 0.0
      %344 = vmatprep.subr.mxu0 0.0
      %345 = vmatpush1.msra.mxu0 0.0
      %346 = vmatprep.subr.mxu0 0.0
      %347 = vmatpush1.msra.mxu0 0.0
      %348 = vmatprep.subr.mxu0 0.0
      %349 = vmatpush1.msra.mxu0 0.0
      %350 = vmatprep.subr.mxu0 0.0
      %351 = vmatpush1.msra.mxu0 0.0
      %352 = vmatprep.subr.mxu0 0.0
      %353 = vmatpush1.msra.mxu0 0.0
      %354 = vmatprep.subr.mxu0 0.0
      %355 = vmatpush1.msra.mxu0 0.0
      %356 = vmatprep.subr.mxu0 0.0
      %357 = vmatpush1.msra.mxu0 0.0
      %358 = vmatprep.subr.mxu0 0.0
      %359 = vmatpush1.msra.mxu0 0.0
      %360 = vmatprep.subr.mxu0 0.0
      %361 = vmatpush1.msra.mxu0 0.0
      %362 = vmatprep.subr.mxu0 0.0
      %363 = vmatpush1.msra.mxu0 0.0
      %364 = vmatprep.subr.mxu0 0.0
      %365 = vmatpush1.msra.mxu0 0.0
      %366 = vmatprep.subr.mxu0 0.0
      %367 = vmatpush1.msra.mxu0 0.0
      %368 = vmatprep.subr.mxu0 0.0
      %369 = vmatpush1.msra.mxu0 0.0
      %370 = vmatprep.subr.mxu0 0.0
      %371 = vmatpush1.msra.mxu0 0.0
      %372 = vmatprep.subr.mxu0 0.0
      %373 = vmatpush1.msra.mxu0 0.0
      %374 = vmatprep.subr.mxu0 0.0
      %375 = vmatpush1.msra.mxu0 0.0
      %376 = vmatprep.subr.mxu0 0.0
      %377 = vmatpush1.msra.mxu0 0.0
      %378 = vmatprep.subr.mxu0 0.0
      %379 = vmatpush1.msra.mxu0 0.0
      %380 = vmatprep.subr.mxu0 0.0
      %381 = vmatpush1.msra.mxu0 0.0
      %382 = vmatprep.mubr.f32.mxu0 0.0
      %383 = vmatmul.mubr.f32.gmra.mrb[0].mxu0 %v316
      %v384 = vpop.f32.mrb[0].mxu0
      %v385 = vadd.f32 0.0, %v384
      %v386 = vpop.f32.mrb[0].mxu0
      %387 = vdwg.mxu0
      %v388 = vrot.slane %v385, 7
      %v389 = vsel %vm206, %v388, 0.0
      %391 = vrot.lane.b32.xlu0 %v385, 120
      %v392 = vpop.permute.xlu0 %391
      %v394 = vrot.slane %v392, 1
      %v395 = vsel %vm207, %v394, 0.0
      %v396 = vadd.f32 %v191, %v389
      %v397 = vadd.f32 %v396, %v395
      %v398 = vmul.f32 %v397, %v189
      %v399 = vsel %vm208, %v398, -inf
      %400 = vmax.xlane.f32.xlu0 %v399
      %v401 = vpop.xlane.xlu0 %400
      %v402 = vsub.f32 %v398, %v401
      %v403 = vmul.f32 %v402, 1.442695
      %v404 = vpow.pop %v403
      %v405 = vsel %vm208, %v404, 0.0
      %406 = vadd.xlane.f32.xlu0 %v405
      %v407 = vpop.xlane.xlu0 %406
      %v408 = vrcp.pop %v407
      %v409 = vmul.f32 %v404, %v408
      %v411 = vsel %vm208, %v409, 0
      %413 = vmatprep.subr.mxu0 0.0
      %414 = vmatpush1.msra.mxu0 %v185
      %415 = vmatprep.subr.mxu0 0.0
      %416 = vmatpush1.msra.mxu0 0.0
      %417 = vmatprep.subr.mxu0 0.0
      %418 = vmatpush1.msra.mxu0 0.0
      %419 = vmatprep.subr.mxu0 0.0
      %420 = vmatpush1.msra.mxu0 0.0
      %421 = vmatprep.subr.mxu0 0.0
      %422 = vmatpush1.msra.mxu0 0.0
      %423 = vmatprep.subr.mxu0 0.0
      %424 = vmatpush1.msra.mxu0 0.0
      %425 = vmatprep.subr.mxu0 0.0
      %426 = vmatpush1.msra.mxu0 0.0
      %427 = vmatprep.subr.mxu0 0.0
      %428 = vmatpush1.msra.mxu0 0.0
      %429 = vmatprep.subr.mxu0 0.0
      %430 = vmatpush1.msra.mxu0 0.0
      %431 = vmatprep.subr.mxu0 0.0
      %432 = vmatpush1.msra.mxu0 0.0
      %433 = vmatprep.subr.mxu0 0.0
      %434 = vmatpush1.msra.mxu0 0.0
      %435 = vmatprep.subr.mxu0 0.0
      %436 = vmatpush1.msra.mxu0 0.0
      %437 = vmatprep.subr.mxu0 0.0
      %438 = vmatpush1.msra.mxu0 0.0
      %439 = vmatprep.subr.mxu0 0.0
      %440 = vmatpush1.msra.mxu0 0.0
      %441 = vmatprep.subr.mxu0 0.0
      %442 = vmatpush1.msra.mxu0 0.0
      %443 = vmatprep.subr.mxu0 0.0
      %444 = vmatpush1.msra.mxu0 0.0
      %445 = vmatprep.subr.mxu0 0.0
      %446 = vmatpush1.msra.mxu0 0.0
      %447 = vmatprep.subr.mxu0 0.0
      %448 = vmatpush1.msra.mxu0 0.0
      %449 = vmatprep.subr.mxu0 0.0
      %450 = vmatpush1.msra.mxu0 0.0
      %451 = vmatprep.subr.mxu0 0.0
      %452 = vmatpush1.msra.mxu0 0.0
      %453 = vmatprep.subr.mxu0 0.0
      %454 = vmatpush1.msra.mxu0 0.0
      %455 = vmatprep.subr.mxu0 0.0
      %456 = vmatpush1.msra.mxu0 0.0
      %457 = vmatprep.subr.mxu0 0.0
      %458 = vmatpush1.msra.mxu0 0.0
      %459 = vmatprep.subr.mxu0 0.0
      %460 = vmatpush1.msra.mxu0 0.0
      %461 = vmatprep.subr.mxu0 0.0
      %462 = vmatpush1.msra.mxu0 0.0
      %463 = vmatprep.subr.mxu0 0.0
      %464 = vmatpush1.msra.mxu0 0.0
      %465 = vmatprep.subr.mxu0 0.0
      %466 = vmatpush1.msra.mxu0 0.0
      %467 = vmatprep.subr.mxu0 0.0
      %468 = vmatpush1.msra.mxu0 0.0
      %469 = vmatprep.subr.mxu0 0.0
      %470 = vmatpush1.msra.mxu0 0.0
      %471 = vmatprep.subr.mxu0 0.0
      %472 = vmatpush1.msra.mxu0 0.0
      %473 = vmatprep.subr.mxu0 0.0
      %474 = vmatpush1.msra.mxu0 0.0
      %475 = vmatprep.subr.mxu0 0.0
      %476 = vmatpush1.msra.mxu0 0.0
      %477 = vmatprep.mubr.f32.mxu0 0.0
      %478 = vmatmul.mubr.f32.gmra.mrb[0].mxu0 %v411
      %v479 = vpop.f32.mrb[0].mxu0
      %v480 = vadd.f32 0.0, %v479
      %v481 = vpop.f32.mrb[0].mxu0
      %482 = vdwg.mxu0
      %v483 = vrot.slane %v480, 7
      %v484 = vsel %vm206, %v483, 0.0
      %486 = vrot.lane.b32.xlu0 %v480, 120
      %v487 = vpop.permute.xlu0 %486
      %v489 = vrot.slane %v487, 1
      %v490 = vsel %vm207, %v489, 0.0
      %v491 = vadd.f32 %v191, %v484
      %v492 = vadd.f32 %v491, %v490
      %v493 = vmul.f32 %v492, %v189
      %494 = vst.msk [vmem:[%s182] sm:$0xff] %vm208, %v493
      %p495 = scmp.lt.s32.totalorder %s14, 1
      %s496 = scalar_select %p495, %s14, 1
      %s497 = smul.addr %s496, 8
      %s498 = scalar_lea.vmem %s3, %s497
      // Predicated region
      $region33: #{tpu_custom_call.1} parent=31 // pred_check
        %p499 = pneg %p105
      $region34: #{tpu_custom_call.1} parent=31 // pred_check_branch
        %501 = sbr.rel (%p499) target = $region36
      $region35: #{tpu_custom_call.1} parent=31 // pred_region
        _
      $region36: #{tpu_custom_call.1} parent=31 // pred_fallthru
        _
    $region32: #{tpu_custom_call.1} parent=5 // pred_fallthru
      _
    %p502 = scmp.le.s32.totalorder 2, %s9
    // Predicated region
    $region37: #{tpu_custom_call.1} parent=5 // pred_check
      %p503 = pneg %p502
    $region38: #{tpu_custom_call.1} parent=5 // pred_check_branch
      %505 = sbr.rel (%p503) target = $region40
    $region39: #{tpu_custom_call.1} parent=5 // pred_region
      %s506 = ssub.s32 %s9, 2
      // Predicated region
      $region41: #{tpu_custom_call.1} parent=39 // pred_check
        %p507 = pneg %p111
      $region42: #{tpu_custom_call.1} parent=39 // pred_check_branch
        %509 = sbr.rel (%p507) target = $region44
      $region43: #{tpu_custom_call.1} parent=39 // pred_region
        %p510 = scmp.lt.s32.totalorder %s15, 1
        %s511 = scalar_select %p510, %s15, 1
        %s512 = smul.addr %s511, 8
        %s513 = scalar_lea.vmem %s3, %s512
      $region44: #{tpu_custom_call.1} parent=39 // pred_fallthru
        _
    $region40: #{tpu_custom_call.1} parent=5 // pred_fallthru
      _
  $region6: #{tpu_custom_call.1} parent=0 // loop_footer
    %s13 = sadd.s32 1, %s9
  $region7: #{tpu_custom_call.1} parent=0 // loop_footer_branch
    %8 = sbr.rel target = $region3
  $region8: #{tpu_custom_call.1} parent=0 // loop_exit
    _

</llo_original>
